<compile_context>
chip_gen: v7x
topology: tpu7x:2x2x1
jax: 0.10.0
libtpu: 0.0.40
codegen_flags: <defaults>
</compile_context>

<pallas_src>
import jax
import jax.numpy as jnp
from jax.experimental import pallas as pl
from jax.experimental.pallas import tpu as pltpu


def _make_kernel(input_dim: int):
    def kernel(x_ref,
               w1_ref, b1_ref,
               w2_ref, b2_ref,
               w3_ref, b3_ref,
               w4_ref, b4_ref,
               o_ref):
        x = x_ref[...]                     # (input_dim, TB) -- batch on lane axis
        w1 = w1_ref[...]                   # (H1, input_dim)

        # ---- Layer 1: K = input_dim (2) is far too small for the MXU.
        #      Outer-product broadcast FMAs on the VPU instead.
        h = w1[:, 0:1] * x[0:1, :]
        for k in range(1, input_dim):
            h = h + w1[:, k:k + 1] * x[k:k + 1, :]
        h = jnp.maximum(h + b1_ref[...], 0.0)                  # (H1, TB)

        # ---- Layers 2 & 3: MXU matmuls; batch fills the wide N dimension.
        h = jnp.dot(w2_ref[...], h, preferred_element_type=jnp.float32)
        h = jnp.maximum(h + b2_ref[...], 0.0)                  # (H2, TB)
        h = jnp.dot(w3_ref[...], h, preferred_element_type=jnp.float32)
        h = jnp.maximum(h + b3_ref[...], 0.0)                  # (H3, TB)

        # ---- Output layer: N = 1 -> VPU multiply + sublane (XLU) reduce.
        logits = jnp.sum(w4_ref[...] * h, axis=0, keepdims=True) + b4_ref[...]

        # Sigmoid: exp goes to the EUP; exact divide keeps numerics within 1e-5.
        o_ref[...] = 1.0 / (1.0 + jnp.exp(-logits))

    return kernel


_LANE_TILE = 256       # multiple of 128-lane vreg width / full MXU N width (v6e/v7x)
_MAX_TILE_B = 16384    # VMEM-budgeted cap (see header comment)


def simple_nn_forward(x, params):
    """x: (batch, input_dim) f32.  params: list of (W, b) in PyTorch (out, in) layout."""
    batch, input_dim = x.shape
    out_dim = params[-1][0].shape[0]
    x = x.astype(jnp.float32)

    if batch < _LANE_TILE:
        # Tiny batch: pad once to a single full 256-lane tile (negligible cost,
        # avoids relying on a block larger than the array).
        padded = _LANE_TILE
        tile_b = _LANE_TILE
        xT = jnp.zeros((input_dim, padded), jnp.float32).at[:, :batch].set(x.T)
    else:
        # No padding: Pallas handles the partial last block.
        padded = batch
        # Aim for >= 2 grid steps (v7x has 2 TensorCores), rounded to 256 lanes,
        # capped so VMEM stays well under every generation's scoped default.
        tile_b = min(_MAX_TILE_B, -(-batch // (2 * _LANE_TILE)) * _LANE_TILE)
        xT = x.T                                   # (input_dim, batch)

    grid = (pl.cdiv(padded, tile_b),)

    (w1, b1), (w2, b2), (w3, b3), (w4, b4) = params
    flat_args = [
        xT,                               # (input_dim, padded)
        w1, b1.reshape(-1, 1),            # (32, 2),  (32, 1)
        w2, b2.reshape(-1, 1),            # (16, 32), (16, 1)
        w3, b3.reshape(-1, 1),            # (8, 16),  (8, 1)
        w4.T, b4.reshape(-1, 1),          # (8, 1),   (1, 1)  last layer as a column
    ]

    # x and the output stream through the grid (double-buffered by Pallas);
    # weights/biases use constant index_maps -> DMA'd once, VMEM-resident.
    def const_spec(a):
        return pl.BlockSpec(a.shape, lambda i: (0, 0))

    in_specs = [pl.BlockSpec((input_dim, tile_b), lambda i: (0, i))]
    in_specs += [const_spec(a) for a in flat_args[1:]]
    out_specs = pl.BlockSpec((out_dim, tile_b), lambda i: (0, i))

    outT = pl.pallas_call(
        _make_kernel(input_dim),
        out_shape=jax.ShapeDtypeStruct((out_dim, padded), jnp.float32),
        grid=grid,
        in_specs=in_specs,
        out_specs=out_specs,
        compiler_params=pltpu.CompilerParams(
            dimension_semantics=("parallel",)),   # shard batch tiles across TCs (v7x)
    )(*flat_args)

    if padded != batch:
        outT = outT[:, :batch]
    if out_dim == 1:
        # (1, batch) -> (batch, 1): identical memory order, pure reshape (free).
        return outT.reshape(batch, 1)
    return outT.T


def init_params(key, input_dim=2, hidden_dims=(32, 16, 8), output_dim=1):
    """nn.Linear-style init: uniform(-1/sqrt(fan_in), 1/sqrt(fan_in)), W in (out, in)."""
    dims = [input_dim] + list(hidden_dims) + [output_dim]
    params = []
    for i in range(len(dims) - 1):
        fan_in, fan_out = dims[i], dims[i + 1]
        key, kw, kb = jax.random.split(key, 3)
        bound = 1.0 / (fan_in ** 0.5)
        w = jax.random.uniform(kw, (fan_out, fan_in), jnp.float32, -bound, bound)
        b = jax.random.uniform(kb, (fan_out,), jnp.float32, -bound, bound)
        params.append((w, b))
    return params


def reference_forward(x, params):
    h = x
    for i, (w, b) in enumerate(params):
        h = h @ w.T + b
        if i < len(params) - 1:
            h = jnp.maximum(h, 0.0)
    return jax.nn.sigmoid(h)


if __name__ == "__main__":
    key = jax.random.PRNGKey(0)
    k_params, k_x = jax.random.split(key)

    input_dim = 2
    params = init_params(k_params, input_dim=input_dim,
                         hidden_dims=(32, 16, 8), output_dim=1)

    # batch=8 exercises the tiny single-tile path; batch=1000 exercises the
    # no-pad multi-step grid with a partial last block (tile_b=512, grid=2).
    for batch in (8, 1000):
        k_x, sub = jax.random.split(k_x)
        x = jax.random.normal(sub, (batch, input_dim), jnp.float32)

        out = jax.block_until_ready(simple_nn_forward(x, params))
        ref = reference_forward(x, params)

        assert out.shape == (batch, 1)
        assert jnp.allclose(out, ref, atol=1e-5, rtol=1e-5), f"mismatch at batch={batch}"

    print("KERNEL_OK")
</pallas_src>

<mosaic_0001>
module attributes {stable_mosaic.version = 11 : i64} {
  func.func @kernel(%arg0: i32, %arg1: memref<2x256xf32, #tpu.memory_space<vmem>>, %arg2: memref<32x2xf32, #tpu.memory_space<vmem>>, %arg3: memref<32x1xf32, #tpu.memory_space<vmem>>, %arg4: memref<16x32xf32, #tpu.memory_space<vmem>>, %arg5: memref<16x1xf32, #tpu.memory_space<vmem>>, %arg6: memref<8x16xf32, #tpu.memory_space<vmem>>, %arg7: memref<8x1xf32, #tpu.memory_space<vmem>>, %arg8: memref<8x1xf32, #tpu.memory_space<vmem>>, %arg9: memref<1x1xf32, #tpu.memory_space<vmem>>, %arg10: memref<1x256xf32, #tpu.memory_space<vmem>>) attributes {dimension_semantics = [#tpu.dimension_semantics<parallel>], iteration_bounds = array<i64: 1>, scalar_prefetch = 0 : i64, scratch_operands = 0 : i64, tpu.core_type = #tpu.core_type<tc>, window_params = [{transform_indices = @transform_0, window_bounds = array<i64: 2, 256>}, {pipeline_mode = #tpu.pipeline_mode<synchronous>, transform_indices = @transform_1, window_bounds = array<i64: 32, 2>}, {pipeline_mode = #tpu.pipeline_mode<synchronous>, transform_indices = @transform_2, window_bounds = array<i64: 32, 1>}, {pipeline_mode = #tpu.pipeline_mode<synchronous>, transform_indices = @transform_3, window_bounds = array<i64: 16, 32>}, {pipeline_mode = #tpu.pipeline_mode<synchronous>, transform_indices = @transform_4, window_bounds = array<i64: 16, 1>}, {pipeline_mode = #tpu.pipeline_mode<synchronous>, transform_indices = @transform_5, window_bounds = array<i64: 8, 16>}, {pipeline_mode = #tpu.pipeline_mode<synchronous>, transform_indices = @transform_6, window_bounds = array<i64: 8, 1>}, {pipeline_mode = #tpu.pipeline_mode<synchronous>, transform_indices = @transform_7, window_bounds = array<i64: 8, 1>}, {pipeline_mode = #tpu.pipeline_mode<synchronous>, transform_indices = @transform_8, window_bounds = array<i64: 1, 1>}, {transform_indices = @transform_9, window_bounds = array<i64: 1, 256>}]} {
    %c0 = arith.constant 0 : index
    %c0_0 = arith.constant 0 : index
    %0 = vector.load %arg1[%c0, %c0_0] : memref<2x256xf32, #tpu.memory_space<vmem>>, vector<2x256xf32>
    %c0_1 = arith.constant 0 : index
    %c0_2 = arith.constant 0 : index
    %1 = vector.load %arg2[%c0_1, %c0_2] : memref<32x2xf32, #tpu.memory_space<vmem>>, vector<32x2xf32>
    %2 = vector.extract_strided_slice %1 {offsets = [0, 0], sizes = [32, 1], strides = [1, 1]} : vector<32x2xf32> to vector<32x1xf32>
    %3 = vector.extract_strided_slice %0 {offsets = [0, 0], sizes = [1, 256], strides = [1, 1]} : vector<2x256xf32> to vector<1x256xf32>
    %4 = vector.broadcast %2 : vector<32x1xf32> to vector<32x256xf32>
    %5 = vector.broadcast %3 : vector<1x256xf32> to vector<32x256xf32>
    %6 = arith.mulf %4, %5 : vector<32x256xf32>
    %7 = vector.extract_strided_slice %1 {offsets = [0, 1], sizes = [32, 1], strides = [1, 1]} : vector<32x2xf32> to vector<32x1xf32>
    %8 = vector.extract_strided_slice %0 {offsets = [1, 0], sizes = [1, 256], strides = [1, 1]} : vector<2x256xf32> to vector<1x256xf32>
    %9 = vector.broadcast %7 : vector<32x1xf32> to vector<32x256xf32>
    %10 = vector.broadcast %8 : vector<1x256xf32> to vector<32x256xf32>
    %11 = arith.mulf %9, %10 : vector<32x256xf32>
    %12 = arith.addf %6, %11 : vector<32x256xf32>
    %c0_3 = arith.constant 0 : index
    %c0_4 = arith.constant 0 : index
    %13 = vector.load %arg3[%c0_3, %c0_4] : memref<32x1xf32, #tpu.memory_space<vmem>>, vector<32x1xf32>
    %14 = vector.broadcast %13 : vector<32x1xf32> to vector<32x256xf32>
    %15 = arith.addf %12, %14 : vector<32x256xf32>
    %cst = arith.constant 0.000000e+00 : f32
    %16 = vector.broadcast %cst : f32 to vector<32x256xf32>
    %17 = arith.maximumf %15, %16 : vector<32x256xf32>
    %c0_5 = arith.constant 0 : index
    %c0_6 = arith.constant 0 : index
    %18 = vector.load %arg4[%c0_5, %c0_6] : memref<16x32xf32, #tpu.memory_space<vmem>>, vector<16x32xf32>
    %cst_7 = arith.constant dense<0.000000e+00> : vector<16x256xf32>
    %19 = tpu.matmul %18, %17, %cst_7 {dimension_numbers = #tpu.dot_dimension_numbers<[1], [0], [0], [1], [0, 0, 1, 1], [], []>} : vector<16x32xf32>, vector<32x256xf32>, vector<16x256xf32> -> vector<16x256xf32>
    %c0_8 = arith.constant 0 : index
    %c0_9 = arith.constant 0 : index
    %20 = vector.load %arg5[%c0_8, %c0_9] : memref<16x1xf32, #tpu.memory_space<vmem>>, vector<16x1xf32>
    %21 = vector.broadcast %20 : vector<16x1xf32> to vector<16x256xf32>
    %22 = arith.addf %19, %21 : vector<16x256xf32>
    %cst_10 = arith.constant 0.000000e+00 : f32
    %23 = vector.broadcast %cst_10 : f32 to vector<16x256xf32>
    %24 = arith.maximumf %22, %23 : vector<16x256xf32>
    %c0_11 = arith.constant 0 : index
    %c0_12 = arith.constant 0 : index
    %25 = vector.load %arg6[%c0_11, %c0_12] : memref<8x16xf32, #tpu.memory_space<vmem>>, vector<8x16xf32>
    %cst_13 = arith.constant dense<0.000000e+00> : vector<8x256xf32>
    %26 = tpu.matmul %25, %24, %cst_13 {dimension_numbers = #tpu.dot_dimension_numbers<[1], [0], [0], [1], [0, 0, 1, 1], [], []>} : vector<8x16xf32>, vector<16x256xf32>, vector<8x256xf32> -> vector<8x256xf32>
    %c0_14 = arith.constant 0 : index
    %c0_15 = arith.constant 0 : index
    %27 = vector.load %arg7[%c0_14, %c0_15] : memref<8x1xf32, #tpu.memory_space<vmem>>, vector<8x1xf32>
    %28 = vector.broadcast %27 : vector<8x1xf32> to vector<8x256xf32>
    %29 = arith.addf %26, %28 : vector<8x256xf32>
    %cst_16 = arith.constant 0.000000e+00 : f32
    %30 = vector.broadcast %cst_16 : f32 to vector<8x256xf32>
    %31 = arith.maximumf %29, %30 : vector<8x256xf32>
    %c0_17 = arith.constant 0 : index
    %c0_18 = arith.constant 0 : index
    %32 = vector.load %arg8[%c0_17, %c0_18] : memref<8x1xf32, #tpu.memory_space<vmem>>, vector<8x1xf32>
    %33 = vector.broadcast %32 : vector<8x1xf32> to vector<8x256xf32>
    %34 = arith.mulf %33, %31 : vector<8x256xf32>
    %cst_19 = arith.constant dense<0.000000e+00> : vector<256xf32>
    %35 = vector.multi_reduction <add>, %34, %cst_19 [0] : vector<8x256xf32> to vector<256xf32>
    %36 = vector.shape_cast %35 : vector<256xf32> to vector<1x256xf32>
    %c0_20 = arith.constant 0 : index
    %c0_21 = arith.constant 0 : index
    %37 = vector.load %arg9[%c0_20, %c0_21] : memref<1x1xf32, #tpu.memory_space<vmem>>, vector<1x1xf32>
    %38 = vector.broadcast %37 : vector<1x1xf32> to vector<1x256xf32>
    %39 = arith.addf %36, %38 : vector<1x256xf32>
    %cst_22 = arith.constant 0.000000e+00 : f32
    %40 = vector.broadcast %cst_22 : f32 to vector<1x256xf32>
    %41 = arith.subf %40, %39 : vector<1x256xf32>
    %42 = math.exp %41 : vector<1x256xf32>
    %cst_23 = arith.constant 1.000000e+00 : f32
    %43 = vector.broadcast %cst_23 : f32 to vector<1x256xf32>
    %44 = arith.addf %43, %42 : vector<1x256xf32>
    %cst_24 = arith.constant 1.000000e+00 : f32
    %45 = vector.broadcast %cst_24 : f32 to vector<1x256xf32>
    %46 = arith.divf %45, %44 : vector<1x256xf32>
    %c0_25 = arith.constant 0 : index
    %c0_26 = arith.constant 0 : index
    %47 = vector.load %arg10[%c0_25, %c0_26] : memref<1x256xf32, #tpu.memory_space<vmem>>, vector<1x256xf32>
    tpu.vector_store %arg10[%c0_25, %c0_26], %46 {strides = array<i32>} : memref<1x256xf32, #tpu.memory_space<vmem>>, vector<1x256xf32>,
    return
  }
  func.func @transform_0(%arg0: i32) -> (i32, i32) {
    %c0_i32 = arith.constant 0 : i32
    %c0_i32_0 = arith.constant 0 : i32
    return %c0_i32, %arg0 : i32, i32
  }
  func.func @transform_1(%arg0: i32) -> (i32, i32) {
    %c0_i32 = arith.constant 0 : i32
    %c0_i32_0 = arith.constant 0 : i32
    %c0_i32_1 = arith.constant 0 : i32
    return %c0_i32, %c0_i32_0 : i32, i32
  }
  func.func @transform_2(%arg0: i32) -> (i32, i32) {
    %c0_i32 = arith.constant 0 : i32
    %c0_i32_0 = arith.constant 0 : i32
    %c0_i32_1 = arith.constant 0 : i32
    return %c0_i32, %c0_i32_0 : i32, i32
  }
  func.func @transform_3(%arg0: i32) -> (i32, i32) {
    %c0_i32 = arith.constant 0 : i32
    %c0_i32_0 = arith.constant 0 : i32
    %c0_i32_1 = arith.constant 0 : i32
    return %c0_i32, %c0_i32_0 : i32, i32
  }
  func.func @transform_4(%arg0: i32) -> (i32, i32) {
    %c0_i32 = arith.constant 0 : i32
    %c0_i32_0 = arith.constant 0 : i32
    %c0_i32_1 = arith.constant 0 : i32
    return %c0_i32, %c0_i32_0 : i32, i32
  }
  func.func @transform_5(%arg0: i32) -> (i32, i32) {
    %c0_i32 = arith.constant 0 : i32
    %c0_i32_0 = arith.constant 0 : i32
    %c0_i32_1 = arith.constant 0 : i32
    return %c0_i32, %c0_i32_0 : i32, i32
  }
  func.func @transform_6(%arg0: i32) -> (i32, i32) {
    %c0_i32 = arith.constant 0 : i32
    %c0_i32_0 = arith.constant 0 : i32
    %c0_i32_1 = arith.constant 0 : i32
    return %c0_i32, %c0_i32_0 : i32, i32
  }
  func.func @transform_7(%arg0: i32) -> (i32, i32) {
    %c0_i32 = arith.constant 0 : i32
    %c0_i32_0 = arith.constant 0 : i32
    %c0_i32_1 = arith.constant 0 : i32
    return %c0_i32, %c0_i32_0 : i32, i32
  }
  func.func @transform_8(%arg0: i32) -> (i32, i32) {
    %c0_i32 = arith.constant 0 : i32
    %c0_i32_0 = arith.constant 0 : i32
    %c0_i32_1 = arith.constant 0 : i32
    return %c0_i32, %c0_i32_0 : i32, i32
  }
  func.func @transform_9(%arg0: i32) -> (i32, i32) {
    %c0_i32 = arith.constant 0 : i32
    %c0_i32_0 = arith.constant 0 : i32
    return %c0_i32, %arg0 : i32, i32
  }
}

</mosaic_0001>

<llo_original>
// kernel: tpu_custom_call.1
$region0: #{tpu_custom_call.1}
  #allocation0 [shape = 'u32[]', space=smem, size = 0x4, offset = 0x4, fixed_abs, tag = 'smem constant byte address 0x4 - core index']
  #allocation1 [shape = 'u32[144,128]{1,0:T(1,128)}', space=vmem, size = 0x12000, scoped, tag = 'internal scratch']
  #allocation2 [shape = 'f32[1,1]{1,0:T(1,128)S(1)}', space=vmem, size = 0x200, scoped, tag = 'scoped memory for tpu_custom_call.1']
  %s0 = inlined_call_operand.vmem [shape: f32[2,256], index: 0, kind: input, shape index: {}]
  %s1 = inlined_call_operand.vmem [shape: f32[32,2], index: 1, kind: input, shape index: {}]
  %s2 = inlined_call_operand.vmem [shape: f32[32,1], index: 2, kind: input, shape index: {}]
  %s3 = inlined_call_operand.vmem [shape: f32[16,32], index: 3, kind: input, shape index: {}]
  %s4 = inlined_call_operand.vmem [shape: f32[16,1], index: 4, kind: input, shape index: {}]
  %s5 = inlined_call_operand.vmem [shape: f32[8,16], index: 5, kind: input, shape index: {}]
  %s6 = inlined_call_operand.vmem [shape: f32[8,1], index: 6, kind: input, shape index: {}]
  %s7 = inlined_call_operand.vmem [shape: f32[8,1], index: 7, kind: input, shape index: {}]
  %s8 = inlined_call_operand.<no memory space> [shape: f32[1,1], index: 8, kind: input, shape index: {}]
  %s9 = inlined_call_operand.hbm [shape: f32[1,256], index: 9, kind: output, shape index: {}]
  %s10 = sld [smem:[#allocation0]]
  $region46: #{tpu_custom_call.1} parent=0
    _
  %s12 = ssub.s32 1, %s10
  %s13 = scalar_select 0, %s12, %s10
  %v14 = vstv %s8
  %15 = vst [vmem:[#allocation2] sm:$0x1] %v14
  $region1: #{tpu_custom_call.1} parent=0
    #allocation3 [shape = 'u8[1024]{0}', space=vmem, size = 0x400, scoped, tag = 'output window, operand 0, single buffered']
    #allocation4 [shape = 's32[1]{0}', space=sflag, size = 0x4, scoped, tag = 'scoped memory for tpu_custom_call.1']
    %16 = vsyncpa [#allocation4], 0
    // Predicated region
    $region2: #{tpu_custom_call.1} parent=1 // pred_check
      _
    $region3: #{tpu_custom_call.1} parent=1 // pred_check_branch
      %18 = sbr.rel (0) target = $region5
    $region4: #{tpu_custom_call.1} parent=1 // pred_region
      _
    $region5: #{tpu_custom_call.1} parent=1 // pred_fallthru
      _
    // Predicated region
    $region6: #{tpu_custom_call.1} parent=1 // pred_check
      _
    $region7: #{tpu_custom_call.1} parent=1 // pred_check_branch
      %20 = sbr.rel (0) target = $region9
    $region8: #{tpu_custom_call.1} parent=1 // pred_region
      _
    $region9: #{tpu_custom_call.1} parent=1 // pred_fallthru
      _
    // Predicated region
    $region10: #{tpu_custom_call.1} parent=1 // pred_check
      _
    $region11: #{tpu_custom_call.1} parent=1 // pred_check_branch
      %22 = sbr.rel (0) target = $region13
    $region12: #{tpu_custom_call.1} parent=1 // pred_region
      _
    $region13: #{tpu_custom_call.1} parent=1 // pred_fallthru
      _
    // Predicated region
    $region14: #{tpu_custom_call.1} parent=1 // pred_check
      _
    $region15: #{tpu_custom_call.1} parent=1 // pred_check_branch
      %24 = sbr.rel (0) target = $region17
    $region16: #{tpu_custom_call.1} parent=1 // pred_region
      _
    $region17: #{tpu_custom_call.1} parent=1 // pred_fallthru
      _
    // Predicated region
    $region18: #{tpu_custom_call.1} parent=1 // pred_check
      _
    $region19: #{tpu_custom_call.1} parent=1 // pred_check_branch
      %26 = sbr.rel (0) target = $region21
    $region20: #{tpu_custom_call.1} parent=1 // pred_region
      _
    $region21: #{tpu_custom_call.1} parent=1 // pred_fallthru
      _
    // Predicated region
    $region22: #{tpu_custom_call.1} parent=1 // pred_check
      _
    $region23: #{tpu_custom_call.1} parent=1 // pred_check_branch
      %28 = sbr.rel (0) target = $region25
    $region24: #{tpu_custom_call.1} parent=1 // pred_region
      _
    $region25: #{tpu_custom_call.1} parent=1 // pred_fallthru
      _
    // Predicated region
    $region26: #{tpu_custom_call.1} parent=1 // pred_check
      _
    $region27: #{tpu_custom_call.1} parent=1 // pred_check_branch
      %30 = sbr.rel (0) target = $region29
    $region28: #{tpu_custom_call.1} parent=1 // pred_region
      _
    $region29: #{tpu_custom_call.1} parent=1 // pred_fallthru
      _
    // Predicated region
    $region30: #{tpu_custom_call.1} parent=1 // pred_check
      _
    $region31: #{tpu_custom_call.1} parent=1 // pred_check_branch
      %32 = sbr.rel (0) target = $region33
    $region32: #{tpu_custom_call.1} parent=1 // pred_region
      _
    $region33: #{tpu_custom_call.1} parent=1 // pred_fallthru
      _
    // Predicated region
    $region34: #{tpu_custom_call.1} parent=1 // pred_check
      _
    $region35: #{tpu_custom_call.1} parent=1 // pred_check_branch
      %34 = sbr.rel (0) target = $region37
    $region36: #{tpu_custom_call.1} parent=1 // pred_region
      _
    $region37: #{tpu_custom_call.1} parent=1 // pred_fallthru
      _
    %v35 = vld [vmem:[%s0] sm:$0xf]
    %v36 = vld [vmem:[%s1] sm:$0xff]
    %v37 = vld [vmem:[%s1 + $0x8] sm:$0xff]
    %v38 = vld [vmem:[%s1 + $0x10] sm:$0xff]
    %v39 = vld [vmem:[%s1 + $0x18] sm:$0xff]
    %41 = vset.pattern.permute.xlu0 0
    %42 = vperm.xlu0 %41, %v36
    %v43 = vpop.permute.xlu0 %42
    %46 = vset.pattern.permute.xlu0 0
    %47 = vperm.xlu0 %46, %v37
    %v48 = vpop.permute.xlu0 %47
    %51 = vset.pattern.permute.xlu0 0
    %52 = vperm.xlu0 %51, %v38
    %v53 = vpop.permute.xlu0 %52
    %56 = vset.pattern.permute.xlu0 0
    %57 = vperm.xlu0 %56, %v39
    %v58 = vpop.permute.xlu0 %57
    %v61 = vlaneseq
    %v62 = vshrl.u32 %v61, 7
    %v63 = vsub.s32 0, %v62
    %v64 = vrot.slane %v35, %v63
    %v65 = vlaneseq
    %v66 = vshrl.u32 %v65, 7
    %v67 = vsub.s32 2, %v66
    %v68 = vrot.slane %v35, %v67
    %v71 = vlaneseq
    %v72 = vshrl.u32 %v71, 7
    %v73 = vsub.s32 0, %v72
    %v74 = vrot.slane %v64, %v73
    %v75 = vlaneseq
    %v76 = vshrl.u32 %v75, 7
    %v77 = vsub.s32 0, %v76
    %v78 = vrot.slane %v68, %v77
    %v79 = vmul.f32 %v43, %v74
    %v80 = vmul.f32 %v43, %v78
    %v81 = vmul.f32 %v48, %v74
    %v82 = vmul.f32 %v48, %v78
    %v83 = vmul.f32 %v53, %v74
    %v84 = vmul.f32 %v53, %v78
    %v85 = vmul.f32 %v58, %v74
    %v86 = vmul.f32 %v58, %v78
    %87 = vset.pattern.permute.xlu0 1
    %88 = vperm.xlu0 %87, %v36
    %v89 = vpop.permute.xlu0 %88
    %91 = vset.pattern.permute.xlu0 1
    %92 = vperm.xlu0 %91, %v37
    %v93 = vpop.permute.xlu0 %92
    %95 = vset.pattern.permute.xlu0 1
    %96 = vperm.xlu0 %95, %v38
    %v97 = vpop.permute.xlu0 %96
    %99 = vset.pattern.permute.xlu0 1
    %100 = vperm.xlu0 %99, %v39
    %v101 = vpop.permute.xlu0 %100
    %v103 = vlaneseq
    %v104 = vshrl.u32 %v103, 7
    %v105 = vsub.s32 1, %v104
    %v106 = vrot.slane %v35, %v105
    %v107 = vlaneseq
    %v108 = vshrl.u32 %v107, 7
    %v109 = vsub.s32 3, %v108
    %v110 = vrot.slane %v35, %v109
    %v113 = vlaneseq
    %v114 = vshrl.u32 %v113, 7
    %v115 = vsub.s32 1, %v114
    %v116 = vrot.slane %v106, %v115
    %v117 = vlaneseq
    %v118 = vshrl.u32 %v117, 7
    %v119 = vsub.s32 1, %v118
    %v120 = vrot.slane %v110, %v119
    %v121 = vmul.f32 %v89, %v116
    %v122 = vmul.f32 %v89, %v120
    %v123 = vmul.f32 %v93, %v116
    %v124 = vmul.f32 %v93, %v120
    %v125 = vmul.f32 %v97, %v116
    %v126 = vmul.f32 %v97, %v120
    %v127 = vmul.f32 %v101, %v116
    %v128 = vmul.f32 %v101, %v120
    %v129 = vadd.f32 %v79, %v121
    %v130 = vadd.f32 %v80, %v122
    %v131 = vadd.f32 %v81, %v123
    %v132 = vadd.f32 %v82, %v124
    %v133 = vadd.f32 %v83, %v125
    %v134 = vadd.f32 %v84, %v126
    %v135 = vadd.f32 %v85, %v127
    %v136 = vadd.f32 %v86, %v128
    %v137 = vld [vmem:[%s2] sm:$0xff]
    %v138 = vld [vmem:[%s2 + $0x8] sm:$0xff]
    %v139 = vld [vmem:[%s2 + $0x10] sm:$0xff]
    %v140 = vld [vmem:[%s2 + $0x18] sm:$0xff]
    %142 = vset.pattern.permute.xlu0 0
    %143 = vperm.xlu0 %142, %v137
    %v144 = vpop.permute.xlu0 %143
    %147 = vset.pattern.permute.xlu0 0
    %148 = vperm.xlu0 %147, %v138
    %v149 = vpop.permute.xlu0 %148
    %152 = vset.pattern.permute.xlu0 0
    %153 = vperm.xlu0 %152, %v139
    %v154 = vpop.permute.xlu0 %153
    %157 = vset.pattern.permute.xlu0 0
    %158 = vperm.xlu0 %157, %v140
    %v159 = vpop.permute.xlu0 %158
    %v161 = vadd.f32 %v129, %v144
    %v162 = vadd.f32 %v130, %v144
    %v163 = vadd.f32 %v131, %v149
    %v164 = vadd.f32 %v132, %v149
    %v165 = vadd.f32 %v133, %v154
    %v166 = vadd.f32 %v134, %v154
    %v167 = vadd.f32 %v135, %v159
    %v168 = vadd.f32 %v136, %v159
    %v169 = vmax.f32 %v161, 0.0
    %v170 = vmax.f32 %v162, 0.0
    %v171 = vmax.f32 %v163, 0.0
    %v172 = vmax.f32 %v164, 0.0
    %v173 = vmax.f32 %v165, 0.0
    %v174 = vmax.f32 %v166, 0.0
    %v175 = vmax.f32 %v167, 0.0
    %v176 = vmax.f32 %v168, 0.0
    %v177 = vld [vmem:[%s3] sm:$0xff]
    %v178 = vld [vmem:[%s3 + $0x8] sm:$0xff]
    %v179 = vld [vmem:[%s4] sm:$0xff]
    %v180 = vld [vmem:[%s4 + $0x8] sm:$0xff]
    %182 = vset.pattern.permute.xlu0 0
    %183 = vperm.xlu0 %182, %v179
    %v184 = vpop.permute.xlu0 %183
    %187 = vset.pattern.permute.xlu0 0
    %188 = vperm.xlu0 %187, %v180
    %v189 = vpop.permute.xlu0 %188
    %vm191 = vcmask 261120
    %v193 = vsel %vm191, %v177, 0
    %v196 = vsel %vm191, %v178, 0
    %198 = vmatprep.subr.mxu0 %v170
    %199 = vmatpush1.msra.mxu0 %v169
    %200 = vmatprep.subr.mxu0 %v172
    %201 = vmatpush1.msra.mxu0 %v171
    %202 = vmatprep.subr.mxu0 %v174
    %203 = vmatpush1.msra.mxu0 %v173
    %204 = vmatprep.subr.mxu0 %v176
    %205 = vmatpush1.msra.mxu0 %v175
    %206 = vmatprep.subr.mxu0 0.0
    %207 = vmatpush1.msra.mxu0 0.0
    %208 = vmatprep.subr.mxu0 0.0
    %209 = vmatpush1.msra.mxu0 0.0
    %210 = vmatprep.subr.mxu0 0.0
    %211 = vmatpush1.msra.mxu0 0.0
    %212 = vmatprep.subr.mxu0 0.0
    %213 = vmatpush1.msra.mxu0 0.0
    %214 = vmatprep.subr.mxu0 0.0
    %215 = vmatpush1.msra.mxu0 0.0
    %216 = vmatprep.subr.mxu0 0.0
    %217 = vmatpush1.msra.mxu0 0.0
    %218 = vmatprep.subr.mxu0 0.0
    %219 = vmatpush1.msra.mxu0 0.0
    %220 = vmatprep.subr.mxu0 0.0
    %221 = vmatpush1.msra.mxu0 0.0
    %222 = vmatprep.subr.mxu0 0.0
    %223 = vmatpush1.msra.mxu0 0.0
    %224 = vmatprep.subr.mxu0 0.0
    %225 = vmatpush1.msra.mxu0 0.0
    %226 = vmatprep.subr.mxu0 0.0
    %227 = vmatpush1.msra.mxu0 0.0
    %228 = vmatprep.subr.mxu0 0.0
    %229 = vmatpush1.msra.mxu0 0.0
    %230 = vmatprep.subr.mxu0 0.0
    %231 = vmatpush1.msra.mxu0 0.0
    %232 = vmatprep.subr.mxu0 0.0
    %233 = vmatpush1.msra.mxu0 0.0
    %234 = vmatprep.subr.mxu0 0.0
    %235 = vmatpush1.msra.mxu0 0.0
    %236 = vmatprep.subr.mxu0 0.0
    %237 = vmatpush1.msra.mxu0 0.0
    %238 = vmatprep.subr.mxu0 0.0
    %239 = vmatpush1.msra.mxu0 0.0
    %240 = vmatprep.subr.mxu0 0.0
    %241 = vmatpush1.msra.mxu0 0.0
    %242 = vmatprep.subr.mxu0 0.0
    %243 = vmatpush1.msra.mxu0 0.0
    %244 = vmatprep.subr.mxu0 0.0
    %245 = vmatpush1.msra.mxu0 0.0
    %246 = vmatprep.subr.mxu0 0.0
    %247 = vmatpush1.msra.mxu0 0.0
    %248 = vmatprep.subr.mxu0 0.0
    %249 = vmatpush1.msra.mxu0 0.0
    %250 = vmatprep.subr.mxu0 0.0
    %251 = vmatpush1.msra.mxu0 0.0
    %252 = vmatprep.subr.mxu0 0.0
    %253 = vmatpush1.msra.mxu0 0.0
    %254 = vmatprep.subr.mxu0 0.0
    %255 = vmatpush1.msra.mxu0 0.0
    %256 = vmatprep.subr.mxu0 0.0
    %257 = vmatpush1.msra.mxu0 0.0
    %258 = vmatprep.subr.mxu0 0.0
    %259 = vmatpush1.msra.mxu0 0.0
    %260 = vmatprep.subr.mxu0 0.0
    %261 = vmatpush1.msra.mxu0 0.0
    %262 = vmatprep.mubr.f32.mxu0 0.0
    %263 = vmatmul.mubr.f32.gmra.mrb[0].mxu0 %v193
    %v264 = vpop.f32.mrb[0].mxu0
    %v265 = vadd.f32 %v184, %v264
    %v266 = vpop.f32.mrb[0].mxu0
    %v267 = vadd.f32 %v184, %v266
    %268 = vmatprep.mubr.f32.mxu0 0.0
    %269 = vmatmul.mubr.f32.gmra.mrb[0].mxu0 %v196
    %v270 = vpop.f32.mrb[0].mxu0
    %v271 = vadd.f32 %v189, %v270
    %v272 = vpop.f32.mrb[0].mxu0
    %v273 = vadd.f32 %v189, %v272
    %274 = vdwg.mxu0
    %v275 = vmax.f32 %v265, 0.0
    %v276 = vmax.f32 %v267, 0.0
    %v277 = vmax.f32 %v271, 0.0
    %v278 = vmax.f32 %v273, 0.0
    %v279 = vld [vmem:[%s5] sm:$0xff]
    %v280 = vld [vmem:[%s6] sm:$0xff]
    %282 = vset.pattern.permute.xlu0 0
    %283 = vperm.xlu0 %282, %v280
    %v284 = vpop.permute.xlu0 %283
    %vm286 = vcmask 130048
    %v288 = vsel %vm286, %v279, 0
    %290 = vmatprep.subr.mxu0 %v276
    %291 = vmatpush1.msra.mxu0 %v275
    %292 = vmatprep.subr.mxu0 %v278
    %293 = vmatpush1.msra.mxu0 %v277
    %294 = vmatprep.subr.mxu0 0.0
    %295 = vmatpush1.msra.mxu0 0.0
    %296 = vmatprep.subr.mxu0 0.0
    %297 = vmatpush1.msra.mxu0 0.0
    %298 = vmatprep.subr.mxu0 0.0
    %299 = vmatpush1.msra.mxu0 0.0
    %300 = vmatprep.subr.mxu0 0.0
    %301 = vmatpush1.msra.mxu0 0.0
    %302 = vmatprep.subr.mxu0 0.0
    %303 = vmatpush1.msra.mxu0 0.0
    %304 = vmatprep.subr.mxu0 0.0
    %305 = vmatpush1.msra.mxu0 0.0
    %306 = vmatprep.subr.mxu0 0.0
    %307 = vmatpush1.msra.mxu0 0.0
    %308 = vmatprep.subr.mxu0 0.0
    %309 = vmatpush1.msra.mxu0 0.0
    %310 = vmatprep.subr.mxu0 0.0
    %311 = vmatpush1.msra.mxu0 0.0
    %312 = vmatprep.subr.mxu0 0.0
    %313 = vmatpush1.msra.mxu0 0.0
    %314 = vmatprep.subr.mxu0 0.0
    %315 = vmatpush1.msra.mxu0 0.0
    %316 = vmatprep.subr.mxu0 0.0
    %317 = vmatpush1.msra.mxu0 0.0
    %318 = vmatprep.subr.mxu0 0.0
    %319 = vmatpush1.msra.mxu0 0.0
    %320 = vmatprep.subr.mxu0 0.0
    %321 = vmatpush1.msra.mxu0 0.0
    %322 = vmatprep.subr.mxu0 0.0
    %323 = vmatpush1.msra.mxu0 0.0
    %324 = vmatprep.subr.mxu0 0.0
    %325 = vmatpush1.msra.mxu0 0.0
    %326 = vmatprep.subr.mxu0 0.0
    %327 = vmatpush1.msra.mxu0 0.0
    %328 = vmatprep.subr.mxu0 0.0
    %329 = vmatpush1.msra.mxu0 0.0
    %330 = vmatprep.subr.mxu0 0.0
    %331 = vmatpush1.msra.mxu0 0.0
    %332 = vmatprep.subr.mxu0 0.0
    %333 = vmatpush1.msra.mxu0 0.0
    %334 = vmatprep.subr.mxu0 0.0
    %335 = vmatpush1.msra.mxu0 0.0
    %336 = vmatprep.subr.mxu0 0.0
    %337 = vmatpush1.msra.mxu0 0.0
    %338 = vmatprep.subr.mxu0 0.0
    %339 = vmatpush1.msra.mxu0 0.0
    %340 = vmatprep.subr.mxu0 0.0
    %341 = vmatpush1.msra.mxu0 0.0
    %342 = vmatprep.subr.mxu0 0.0
    %343 = vmatpush1.msra.mxu0 0.0
    %344 = vmatprep.subr.mxu0 0.0
    %345 = vmatpush1.msra.mxu0 0.0
    %346 = vmatprep.subr.mxu0 0.0
    %347 = vmatpush1.msra.mxu0 0.0
    %348 = vmatprep.subr.mxu0 0.0
    %349 = vmatpush1.msra.mxu0 0.0
    %350 = vmatprep.subr.mxu0 0.0
    %351 = vmatpush1.msra.mxu0 0.0
    %352 = vmatprep.subr.mxu0 0.0
    %353 = vmatpush1.msra.mxu0 0.0
    %354 = vmatprep.mubr.f32.mxu0 0.0
    %355 = vmatmul.mubr.f32.gmra.mrb[0].mxu0 %v288
    %v356 = vpop.f32.mrb[0].mxu0
    %v357 = vadd.f32 %v284, %v356
    %v358 = vpop.f32.mrb[0].mxu0
    %v359 = vadd.f32 %v284, %v358
    %360 = vdwg.mxu0
    %v361 = vmax.f32 %v357, 0.0
    %v362 = vmax.f32 %v359, 0.0
    %v363 = vld [vmem:[%s7] sm:$0xff]
    %365 = vset.pattern.permute.xlu0 0
    %366 = vperm.xlu0 %365, %v363
    %v367 = vpop.permute.xlu0 %366
    %v369 = vmul.f32 %v367, %v361
    %v370 = vmul.f32 %v367, %v362
    %v371 = vrot.slane %v369, 4
    %v372 = vadd.f32 %v369, %v371
    %v373 = vrot.slane %v372, 2
    %v374 = vadd.f32 %v372, %v373
    %v375 = vrot.slane %v374, 1
    %v376 = vadd.f32 %v374, %v375
    %v377 = vrot.slane %v370, 4
    %v378 = vadd.f32 %v370, %v377
    %v379 = vrot.slane %v378, 2
    %v380 = vadd.f32 %v378, %v379
    %v381 = vrot.slane %v380, 1
    %v382 = vadd.f32 %v380, %v381
    %v383 = vld [vmem:[#allocation2] sm:$0x1]
    %385 = vset.pattern.permute.xlu0 0
    %386 = vperm.xlu0 %385, %v383
    %v387 = vpop.permute.xlu0 %386
    %v389 = vlaneseq
    %v390 = vshrl.u32 %v389, 7
    %v391 = vsub.s32 0, %v390
    %v392 = vrot.slane %v387, %v391
    %v393 = vadd.f32 %v376, %v392
    %v394 = vadd.f32 %v382, %v392
    %v395 = vsub.f32 0.0, %v393
    %v396 = vsub.f32 0.0, %v394
    %v397 = vmul.f32 %v395, 1.442695
    %v398 = vpow.pop %v397
    %v399 = vmul.f32 %v396, 1.442695
    %v400 = vpow.pop %v399
    %v401 = vadd.f32 %v398, 1.0
    %v402 = vadd.f32 %v400, 1.0
    %v403 = vrcp.pop %v401
    %v404 = vmul.f32 1.0, %v403
    %v405 = vrcp.pop %v402
    %v406 = vmul.f32 1.0, %v405
    %v409 = vcombine.low %v404, %v406
    %v411 = vunpack.c.l.s4 1966171168
    %v412 = vunpack.c.0.s8 %v411
    %v413 = vlaneseq
    %v414 = vshrl.u32 %v413, 7
    %v415 = vsub.s32 %v412, %v414
    %v416 = vrot.slane %v409, %v415
    %v418 = vunpack.c.l.s4 1966171168
    %v419 = vunpack.c.0.s8 %v418
    %v420 = vlaneseq
    %v421 = vshrl.u32 %v420, 7
    %v422 = vsub.s32 %v419, %v421
    %v423 = vrot.slane %v416, %v422
    %v425 = vlaneseq
    %vm426 = vcmp.ge.s32.totalorder %v425, 0
    %vm427 = vcmp.lt.s32.totalorder %v425, 256
    %vm428 = vmand %vm426, %vm427
    %429 = vst.msk [vmem:[#allocation3] sm:$0x3] %vm428, %v423
    // Predicated region
    $region38: #{tpu_custom_call.1} parent=1 // pred_check
      _
    $region39: #{tpu_custom_call.1} parent=1 // pred_check_branch
      %431 = sbr.rel (0) target = $region41
    $region40: #{tpu_custom_call.1} parent=1 // pred_region
      %s433 = ssub.s32 32, 32
      %434 = vsyncadd [#allocation4], %s433
      %s436 = sshll.u32 [#allocation3], 4
      %s437 = int_to_ptr.vmem [resolvable:$true] %s436
      %439 = dma.vmem_to_hbm [thread:$0]  %s437, 32, %s9, [#allocation4]
    $region41: #{tpu_custom_call.1} parent=1 // pred_fallthru
      _
    // Predicated region
    $region42: #{tpu_custom_call.1} parent=1 // pred_check
      _
    $region43: #{tpu_custom_call.1} parent=1 // pred_check_branch
      %441 = sbr.rel (0) target = $region45
    $region44: #{tpu_custom_call.1} parent=1 // pred_region
      %442 = dma.done [#allocation4], 32
    $region45: #{tpu_custom_call.1} parent=1 // pred_fallthru
      _
    %443 = vsyncpa [#allocation4], 1

</llo_original>
